<compile_context>
chip_gen: v6e
topology: v6e:2x2x1
jax: 0.10.0
libtpu: 0.0.40
codegen_flags: <defaults>
</compile_context>

<pallas_src>
import functools
from math import sqrt

import jax
import jax.numpy as jnp
from jax.experimental import pallas as pl
from jax.experimental.pallas import tpu as pltpu


# ---------------------------------------------------------------------------
# Pallas attention kernels (super-batch G = B*H folded into each grid step)
# ---------------------------------------------------------------------------
def _attn_softmax_kernel(q_ref, k_ref, v_ref, o_ref, *, scale):
    """Fast path: the whole S axis fits one tile -> plain stable softmax.

    q_ref: (TG, TL, E), k_ref: (TG, S, E), v_ref: (TG, S, D), o_ref: (TG, TL, D)
    """
    q = q_ref[...]
    if scale != 1.0:                       # static branch; normally folded into Wq
        q = q * jnp.asarray(scale, dtype=q.dtype)
    k = k_ref[...]
    v = v_ref[...]

    # scores[g, l, s] = sum_e q[g, l, e] * k[g, s, e]  (MXU, f32 accumulation,
    # no in-kernel transpose of k).
    s = jnp.einsum("gle,gse->gls", q, k, preferred_element_type=jnp.float32)
    m = jnp.max(s, axis=-1, keepdims=True)
    p = jnp.exp(s - m)
    denom = jnp.sum(p, axis=-1, keepdims=True)
    out = jnp.einsum("gls,gsd->gld", p.astype(v.dtype), v,
                     preferred_element_type=jnp.float32)
    # Normalize the (TL, D)-sized output (cheaper than normalizing (TL, S) p);
    # exact division for parity with the reference softmax.
    o_ref[...] = (out / denom).astype(o_ref.dtype)


def _attn_online_kernel(q_ref, k_ref, v_ref, o_ref, m_sc, l_sc, acc_sc, *, scale):
    """Online-softmax (flash) path for S tiled over multiple blocks.

    Scratch: m_sc / l_sc (TG, TL, 1) f32, acc_sc (TG, TL, D) f32.
    """
    sb = pl.program_id(2)

    @pl.when(sb == 0)
    def _init():
        m_sc[...] = jnp.full_like(m_sc, -jnp.inf)
        l_sc[...] = jnp.zeros_like(l_sc)
        acc_sc[...] = jnp.zeros_like(acc_sc)

    q = q_ref[...]
    if scale != 1.0:
        q = q * jnp.asarray(scale, dtype=q.dtype)

    s = jnp.einsum("gle,gse->gls", q, k_ref[...],
                   preferred_element_type=jnp.float32)
    m_prev = m_sc[...]
    m_new = jnp.maximum(m_prev, jnp.max(s, axis=-1, keepdims=True))
    alpha = jnp.exp(m_prev - m_new)
    p = jnp.exp(s - m_new)
    l_sc[...] = alpha * l_sc[...] + jnp.sum(p, axis=-1, keepdims=True)
    acc_sc[...] = alpha * acc_sc[...] + jnp.einsum(
        "gls,gsd->gld", p.astype(v_ref.dtype), v_ref[...],
        preferred_element_type=jnp.float32)
    m_sc[...] = m_new

    @pl.when(sb == pl.num_programs(2) - 1)
    def _finalize():
        o_ref[...] = (acc_sc[...] / l_sc[...]).astype(o_ref.dtype)


# ---------------------------------------------------------------------------
# Tiling helpers
# ---------------------------------------------------------------------------
def _round_up(n, m):
    return ((n + m - 1) // m) * m


def _largest_divisor_leq(n, cap):
    cap = max(1, min(n, cap))
    for t in range(cap, 0, -1):
        if n % t == 0:
            return t
    return 1


def _pick_tile(n, max_tile):
    """Tile for a (sublane) sequence dim: full extent if it fits, otherwise the
    largest 8-aligned divisor <= max_tile; falls back to the full extent (which
    is always a legal block) if no aligned divisor exists."""
    if n <= max_tile:
        return n
    start = max_tile - (max_tile % 8)
    for t in range(start, 7, -8):
        if n % t == 0:
            return t
    # TODO(synk): pad-and-mask for very long lengths with no 8-aligned divisor.
    return n


# ---------------------------------------------------------------------------
# Pallas attention wrapper
# ---------------------------------------------------------------------------
def flash_attention(q, k, v, scale=1.0, *, max_tile_l=256, max_tile_s=512,
                    max_tile_g=1024, compute_dtype=None,
                    vmem_block_budget_bytes=24 * 1024 * 1024):
    """q (B,H,L,E), k (B,H,S,E), v (B,H,S,D) -> (B,H,L,D)."""
    B, H, L, E = q.shape
    _, _, S, D = v.shape

    if compute_dtype is not None:
        q = q.astype(compute_dtype)
        k = k.astype(compute_dtype)
        v = v.astype(compute_dtype)
    out_dtype = q.dtype

    # Free, contiguous collapse of (B, H) into one super-batch axis.
    G = B * H
    q3 = q.reshape(G, L, E)
    k3 = k.reshape(G, S, E)
    v3 = v.reshape(G, S, D)

    TL = _pick_tile(L, max_tile_l)
    TS = _pick_tile(S, max_tile_s)
    num_l = L // TL
    num_s = S // TS

    # --- super-batch tile TG, sized with lane/sublane padding in mind -------
    itemsize = jnp.dtype(q3.dtype).itemsize
    sub = 8 if itemsize >= 4 else 32 // itemsize
    per_g = (_round_up(TL, sub) * _round_up(E, 128)          # q block
             + _round_up(TS, sub) * _round_up(E, 128)        # k block
             + _round_up(TS, sub) * _round_up(D, 128)        # v block
             + _round_up(TL, sub) * _round_up(D, 128)        # out block
             ) * itemsize
    per_g *= 2                                               # double-buffering
    if num_s > 1:                                            # f32 online-softmax scratch
        per_g += _round_up(TL, 8) * (2 * 128 + _round_up(D, 128)) * 4
    tg_cap = max(1, vmem_block_budget_bytes // max(per_g, 1))
    TG = _largest_divisor_leq(G, min(max_tile_g, tg_cap))
    # Keep >= 2 blocks on a "parallel" grid axis so v7x's two TensorCores both
    # get work; single-TC v5e/v6e are indifferent to this split.
    if num_l == 1 and G // TG == 1 and G % 2 == 0:
        TG = G // 2
    num_g = G // TG

    scale = float(scale)
    vmem_limit = 32 * 1024 * 1024

    if num_s == 1:
        # ---- fast path: no online softmax, no scratch, 2-D grid ----
        out3 = pl.pallas_call(
            functools.partial(_attn_softmax_kernel, scale=scale),
            out_shape=jax.ShapeDtypeStruct((G, L, D), out_dtype),
            grid_spec=pltpu.PrefetchScalarGridSpec(
                num_scalar_prefetch=0,
                grid=(num_g, num_l),
                in_specs=[
                    pl.BlockSpec((TG, TL, E), lambda g, lb: (g, lb, 0)),
                    pl.BlockSpec((TG, TS, E), lambda g, lb: (g, 0, 0)),
                    pl.BlockSpec((TG, TS, D), lambda g, lb: (g, 0, 0)),
                ],
                out_specs=pl.BlockSpec((TG, TL, D), lambda g, lb: (g, lb, 0)),
            ),
            compiler_params=pltpu.CompilerParams(
                dimension_semantics=("parallel", "parallel"),
                vmem_limit_bytes=vmem_limit,
            ),
        )(q3, k3, v3)
    else:
        # ---- online-softmax path: S tiled, reduction axis last ("arbitrary") ----
        out3 = pl.pallas_call(
            functools.partial(_attn_online_kernel, scale=scale),
            out_shape=jax.ShapeDtypeStruct((G, L, D), out_dtype),
            grid_spec=pltpu.PrefetchScalarGridSpec(
                num_scalar_prefetch=0,
                grid=(num_g, num_l, num_s),
                in_specs=[
                    pl.BlockSpec((TG, TL, E), lambda g, lb, sb: (g, lb, 0)),
                    pl.BlockSpec((TG, TS, E), lambda g, lb, sb: (g, sb, 0)),
                    pl.BlockSpec((TG, TS, D), lambda g, lb, sb: (g, sb, 0)),
                ],
                out_specs=pl.BlockSpec((TG, TL, D),
                                       lambda g, lb, sb: (g, lb, 0)),
                scratch_shapes=[
                    pltpu.VMEM((TG, TL, 1), jnp.float32),
                    pltpu.VMEM((TG, TL, 1), jnp.float32),
                    pltpu.VMEM((TG, TL, D), jnp.float32),
                ],
            ),
            compiler_params=pltpu.CompilerParams(
                dimension_semantics=("parallel", "parallel", "arbitrary"),
                vmem_limit_bytes=vmem_limit,
            ),
        )(q3, k3, v3)

    return out3.reshape(B, H, L, D)


def _attention_reference(q, k, v, scale):
    """Pure-jnp FullAttention on head-major layout, for validation."""
    s = jnp.einsum("bhle,bhse->bhls", q, k)
    a = jax.nn.softmax(scale * s, axis=-1)
    return jnp.einsum("bhls,bhsd->bhld", a, v)


# ---------------------------------------------------------------------------
# JAX glue: LayerNorm / MLP / AttentionLayer / TSA / SegMerging / scale_block
# ---------------------------------------------------------------------------
def _layer_norm(x, gamma, beta, eps=1e-5):
    mean = jnp.mean(x, axis=-1, keepdims=True)
    var = jnp.mean(jnp.square(x - mean), axis=-1, keepdims=True)
    return (x - mean) * jax.lax.rsqrt(var + eps) * gamma + beta


def _mlp(x, p):
    h = jax.nn.gelu(x @ p["W1"] + p["b1"], approximate=False)
    return h @ p["W2"] + p["b2"]


def _attention_layer(p, queries, keys, values, n_heads, attn_impl="auto"):
    """AttentionLayer (mix=True): q (B,L,dm), k/v (B,S,dm) -> (B,L,dm)."""
    B, L, d_model = queries.shape
    S = keys.shape[1]
    H = n_heads
    E = p["Wq"].shape[1] // H      # d_keys
    D = p["Wv"].shape[1] // H      # d_values
    scale = 1.0 / sqrt(E)

    if attn_impl == "pallas":
        use_pallas = True
    elif attn_impl == "ref":
        use_pallas = False
    else:
        # "auto": only dispatch the Pallas kernel when the per-head problem is
        # big enough that flash tiling beats a fused XLA softmax-attention.
        use_pallas = (L >= 128) or (S >= 128) or (L * S >= 16384)

    # Head-major projections: the (B,L,H,E)->(B,H,L,E) transpose is folded into
    # the projection einsum's output layout (no separate HBM transpose pass).
    # The softmax scale is folded into the Q projection weights/bias so the
    # kernel never multiplies by it.
    Wq = p["Wq"].reshape(d_model, H, E) * scale
    bq = p["bq"].reshape(1, H, 1, E) * scale
    q = jnp.einsum("bld,dhe->bhle", queries, Wq) + bq
    k = jnp.einsum("bsd,dhe->bhse", keys, p["Wk"].reshape(d_model, H, E))
    k = k + p["bk"].reshape(1, H, 1, E)
    v = jnp.einsum("bsd,dhe->bhse", values, p["Wv"].reshape(d_model, H, D))
    v = v + p["bv"].reshape(1, H, 1, D)

    if use_pallas:
        out = flash_attention(q, k, v)          # scale already folded -> 1.0
    else:
        out = _attention_reference(q, k, v, 1.0)

    # mix=True: PyTorch does out(B,L,H,D).transpose(2,1).contiguous().view(B,L,-1),
    # which on our (B,H,L,D) head-major output is a plain row-major reshape.
    out = out.reshape(B, L, H * D)
    return out @ p["Wo"] + p["bo"]


def _two_stage_attention(p, x, n_heads, attn_impl="auto"):
    """x: (B, ts_d, seg_num, d_model) -> same shape."""
    b, ts_d, seg_num, d_model = x.shape
    factor = p["router"].shape[1]

    # --- stage 1: attention across time (segments) ---
    time_in = x.reshape(b * ts_d, seg_num, d_model)
    time_enc = _attention_layer(p["time_attention"], time_in, time_in, time_in,
                                n_heads, attn_impl)
    dim_in = _layer_norm(time_in + time_enc, p["g1"], p["b1"])   # dropout = id
    dim_in = _layer_norm(dim_in + _mlp(dim_in, p["MLP1"]), p["g2"], p["b2"])

    # --- stage 2: attention across data dimensions via the router ---
    dim_send = dim_in.reshape(b, ts_d, seg_num, d_model).transpose(0, 2, 1, 3)
    dim_send = dim_send.reshape(b * seg_num, ts_d, d_model)
    batch_router = jnp.broadcast_to(
        p["router"][None], (b,) + p["router"].shape
    ).reshape(b * seg_num, factor, d_model)
    dim_buffer = _attention_layer(p["dim_sender"], batch_router, dim_send,
                                  dim_send, n_heads, attn_impl)
    dim_receive = _attention_layer(p["dim_receiver"], dim_send, dim_buffer,
                                   dim_buffer, n_heads, attn_impl)
    dim_enc = _layer_norm(dim_send + dim_receive, p["g3"], p["b3"])
    dim_enc = _layer_norm(dim_enc + _mlp(dim_enc, p["MLP2"]), p["g4"], p["b4"])

    return dim_enc.reshape(b, seg_num, ts_d, d_model).transpose(0, 2, 1, 3)


def _seg_merging(p, x, win_size):
    b, ts_d, seg_num, d_model = x.shape
    pad_num = seg_num % win_size
    if pad_num != 0:
        pad_num = win_size - pad_num
        x = jnp.concatenate([x, x[:, :, -pad_num:, :]], axis=2)
    segs = [x[:, :, i::win_size, :] for i in range(win_size)]
    x = jnp.concatenate(segs, axis=-1)          # (b, ts_d, seg/win, win*d_model)
    x = _layer_norm(x, p["g"], p["b"])
    return x @ p["W"] + p["bias"]


def scale_block_forward(params, x, win_size, n_heads, attn_impl="auto"):
    if win_size > 1:
        x = _seg_merging(params["merge"], x, win_size)
    for lp in params["layers"]:
        x = _two_stage_attention(lp, x, n_heads, attn_impl)
    return x


# ---------------------------------------------------------------------------
# Deterministic parameter construction
# ---------------------------------------------------------------------------
def _linear_params(key, d_in, d_out):
    kw, kb = jax.random.split(key)
    lim = 1.0 / sqrt(d_in)
    W = jax.random.uniform(kw, (d_in, d_out), jnp.float32, -lim, lim)
    b = jax.random.uniform(kb, (d_out,), jnp.float32, -lim, lim)
    return W, b


def _attention_layer_params(key, d_model, n_heads):
    d_keys = d_model // n_heads
    d_values = d_model // n_heads
    kq, kk, kv, ko = jax.random.split(key, 4)
    Wq, bq = _linear_params(kq, d_model, d_keys * n_heads)
    Wk, bk = _linear_params(kk, d_model, d_keys * n_heads)
    Wv, bv = _linear_params(kv, d_model, d_values * n_heads)
    Wo, bo = _linear_params(ko, d_values * n_heads, d_model)
    return dict(Wq=Wq, bq=bq, Wk=Wk, bk=bk, Wv=Wv, bv=bv, Wo=Wo, bo=bo)


def _tsa_params(key, seg_num, factor, d_model, n_heads, d_ff):
    keys = jax.random.split(key, 8)
    p = dict(
        time_attention=_attention_layer_params(keys[0], d_model, n_heads),
        dim_sender=_attention_layer_params(keys[1], d_model, n_heads),
        dim_receiver=_attention_layer_params(keys[2], d_model, n_heads),
        router=jax.random.normal(keys[3], (seg_num, factor, d_model), jnp.float32),
    )
    W1, b1 = _linear_params(keys[4], d_model, d_ff)
    W2, b2 = _linear_params(keys[5], d_ff, d_model)
    p["MLP1"] = dict(W1=W1, b1=b1, W2=W2, b2=b2)
    W1, b1 = _linear_params(keys[6], d_model, d_ff)
    W2, b2 = _linear_params(keys[7], d_ff, d_model)
    p["MLP2"] = dict(W1=W1, b1=b1, W2=W2, b2=b2)
    for i in range(1, 5):
        p[f"g{i}"] = jnp.ones((d_model,), jnp.float32)
        p[f"b{i}"] = jnp.zeros((d_model,), jnp.float32)
    return p


def _scale_block_params(key, win_size, d_model, n_heads, d_ff, depth,
                        seg_num, factor):
    params = {}
    keys = jax.random.split(key, depth + 1)
    if win_size > 1:
        W, bias = _linear_params(keys[0], win_size * d_model, d_model)
        params["merge"] = dict(
            g=jnp.ones((win_size * d_model,), jnp.float32),
            b=jnp.zeros((win_size * d_model,), jnp.float32),
            W=W, bias=bias)
    params["layers"] = [
        _tsa_params(keys[1 + i], seg_num, factor, d_model, n_heads, d_ff)
        for i in range(depth)
    ]
    return params


if __name__ == "__main__":
    key = jax.random.PRNGKey(0)
    k_x, k_p = jax.random.split(key)

    # Small shapes consistent with scale_block:
    # batch=2, ts_d=4, input seg_num=8, d_model=32, heads=4, win_size=2
    # (post-merge seg_num seen by the TSA layer / router = 4), d_ff=64,
    # depth=1, router factor=2.
    B, TS_D, SEG_IN, D_MODEL, N_HEADS = 2, 4, 8, 32, 4
    WIN, D_FF, DEPTH, FACTOR = 2, 64, 1, 2
    SEG_MERGED = SEG_IN // WIN

    x = jax.random.normal(k_x, (B, TS_D, SEG_IN, D_MODEL), jnp.float32)
    params = _scale_block_params(k_p, WIN, D_MODEL, N_HEADS, D_FF, DEPTH,
                                 SEG_MERGED, FACTOR)

    # Unit check 1: fast path (single S tile) vs pure-jnp reference.
    kq, kk, kv = jax.random.split(jax.random.PRNGKey(1), 3)
    sc = 1.0 / sqrt(8.0)
    q_t = jax.random.normal(kq, (2, N_HEADS, 8, 8), jnp.float32)
    k_t = jax.random.normal(kk, (2, N_HEADS, 8, 8), jnp.float32)
    v_t = jax.random.normal(kv, (2, N_HEADS, 8, 8), jnp.float32)
    got = jax.block_until_ready(flash_attention(q_t, k_t, v_t, sc))
    want = _attention_reference(q_t, k_t, v_t, sc)
    assert jnp.allclose(got, want, atol=5e-3, rtol=5e-3), "fast-path mismatch"

    # Unit check 2: online-softmax path (S tiled into 2 blocks).
    kq2, kk2, kv2 = jax.random.split(jax.random.PRNGKey(2), 3)
    q2 = jax.random.normal(kq2, (2, N_HEADS, 8, 8), jnp.float32)
    k2 = jax.random.normal(kk2, (2, N_HEADS, 16, 8), jnp.float32)
    v2 = jax.random.normal(kv2, (2, N_HEADS, 16, 8), jnp.float32)
    got2 = jax.block_until_ready(flash_attention(q2, k2, v2, sc, max_tile_s=8))
    want2 = _attention_reference(q2, k2, v2, sc)
    assert jnp.allclose(got2, want2, atol=5e-3, rtol=5e-3), "online-path mismatch"

    # Full scale_block forward with the Pallas attention core vs jnp reference.
    fwd = jax.jit(functools.partial(scale_block_forward, win_size=WIN,
                                    n_heads=N_HEADS, attn_impl="pallas"))
    out = jax.block_until_ready(fwd(params, x))
    ref = scale_block_forward(params, x, WIN, N_HEADS, attn_impl="ref")

    assert out.shape == (B, TS_D, SEG_MERGED, D_MODEL)
    assert jnp.allclose(out, ref, atol=2e-2, rtol=2e-2), "mismatch vs jnp reference"

    print("KERNEL_OK")
</pallas_src>

<mosaic_0001>
module attributes {stable_mosaic.version = 11 : i64} {
  func.func @_attn_softmax_kernel(%arg0: i32, %arg1: i32, %arg2: memref<4x8x8xf32, #tpu.memory_space<vmem>>, %arg3: memref<4x8x8xf32, #tpu.memory_space<vmem>>, %arg4: memref<4x8x8xf32, #tpu.memory_space<vmem>>, %arg5: memref<4x8x8xf32, #tpu.memory_space<vmem>>) attributes {dimension_semantics = [#tpu.dimension_semantics<parallel>, #tpu.dimension_semantics<parallel>], iteration_bounds = array<i64: 2, 1>, scalar_prefetch = 0 : i64, scratch_operands = 0 : i64, tpu.core_type = #tpu.core_type<tc>, window_params = [{transform_indices = @transform_0, window_bounds = array<i64: 4, 8, 8>}, {transform_indices = @transform_1, window_bounds = array<i64: 4, 8, 8>}, {transform_indices = @transform_2, window_bounds = array<i64: 4, 8, 8>}, {transform_indices = @transform_3, window_bounds = array<i64: 4, 8, 8>}]} {
    %c0 = arith.constant 0 : index
    %c0_0 = arith.constant 0 : index
    %c0_1 = arith.constant 0 : index
    %0 = vector.load %arg2[%c0, %c0_0, %c0_1] : memref<4x8x8xf32, #tpu.memory_space<vmem>>, vector<4x8x8xf32>
    %cst = arith.constant 0.353553385 : f32
    %1 = vector.broadcast %cst : f32 to vector<4x8x8xf32>
    %2 = arith.mulf %0, %1 : vector<4x8x8xf32>
    %c0_2 = arith.constant 0 : index
    %c0_3 = arith.constant 0 : index
    %c0_4 = arith.constant 0 : index
    %3 = vector.load %arg3[%c0_2, %c0_3, %c0_4] : memref<4x8x8xf32, #tpu.memory_space<vmem>>, vector<4x8x8xf32>
    %c0_5 = arith.constant 0 : index
    %c0_6 = arith.constant 0 : index
    %c0_7 = arith.constant 0 : index
    %4 = vector.load %arg4[%c0_5, %c0_6, %c0_7] : memref<4x8x8xf32, #tpu.memory_space<vmem>>, vector<4x8x8xf32>
    "tpu.trace_start"() <{level = 10 : i32, message = "gle,gse->gls"}> : () -> ()
    %cst_8 = arith.constant dense<0.000000e+00> : vector<4x8x8xf32>
    %5 = tpu.matmul %2, %3, %cst_8 {dimension_numbers = #tpu.dot_dimension_numbers<[2], [2], [1], [1], [0, 0, 0, 1, 1, 1], [0], [0]>} : vector<4x8x8xf32>, vector<4x8x8xf32>, vector<4x8x8xf32> -> vector<4x8x8xf32>
    "tpu.trace_stop"() : () -> ()
    %cst_9 = arith.constant dense<0xFF800000> : vector<4x8xf32>
    %6 = vector.multi_reduction <maximumf>, %5, %cst_9 [2] : vector<4x8x8xf32> to vector<4x8xf32>
    %7 = vector.shape_cast %6 : vector<4x8xf32> to vector<4x8x1xf32>
    %8 = vector.broadcast %7 : vector<4x8x1xf32> to vector<4x8x8xf32>
    %9 = arith.subf %5, %8 : vector<4x8x8xf32>
    %10 = math.exp %9 : vector<4x8x8xf32>
    %cst_10 = arith.constant dense<0.000000e+00> : vector<4x8xf32>
    %11 = vector.multi_reduction <add>, %10, %cst_10 [2] : vector<4x8x8xf32> to vector<4x8xf32>
    %12 = vector.shape_cast %11 : vector<4x8xf32> to vector<4x8x1xf32>
    "tpu.trace_start"() <{level = 10 : i32, message = "gls,gsd->gld"}> : () -> ()
    %cst_11 = arith.constant dense<0.000000e+00> : vector<4x8x8xf32>
    %13 = tpu.matmul %10, %4, %cst_11 {dimension_numbers = #tpu.dot_dimension_numbers<[2], [1], [1], [2], [0, 0, 0, 1, 1, 2], [0], [0]>} : vector<4x8x8xf32>, vector<4x8x8xf32>, vector<4x8x8xf32> -> vector<4x8x8xf32>
    "tpu.trace_stop"() : () -> ()
    %14 = vector.broadcast %12 : vector<4x8x1xf32> to vector<4x8x8xf32>
    %15 = arith.divf %13, %14 : vector<4x8x8xf32>
    %c0_12 = arith.constant 0 : index
    %c0_13 = arith.constant 0 : index
    %c0_14 = arith.constant 0 : index
    %16 = vector.load %arg5[%c0_12, %c0_13, %c0_14] : memref<4x8x8xf32, #tpu.memory_space<vmem>>, vector<4x8x8xf32>
    tpu.vector_store %arg5[%c0_12, %c0_13, %c0_14], %15 {strides = array<i32>} : memref<4x8x8xf32, #tpu.memory_space<vmem>>, vector<4x8x8xf32>,
    return
  }
  func.func @transform_0(%arg0: i32, %arg1: i32) -> (i32, i32, i32) {
    %c0_i32 = arith.constant 0 : i32
    %c0_i32_0 = arith.constant 0 : i32
    return %arg0, %arg1, %c0_i32 : i32, i32, i32
  }
  func.func @transform_1(%arg0: i32, %arg1: i32) -> (i32, i32, i32) {
    %c0_i32 = arith.constant 0 : i32
    %c0_i32_0 = arith.constant 0 : i32
    %c0_i32_1 = arith.constant 0 : i32
    return %arg0, %c0_i32, %c0_i32_0 : i32, i32, i32
  }
  func.func @transform_2(%arg0: i32, %arg1: i32) -> (i32, i32, i32) {
    %c0_i32 = arith.constant 0 : i32
    %c0_i32_0 = arith.constant 0 : i32
    %c0_i32_1 = arith.constant 0 : i32
    return %arg0, %c0_i32, %c0_i32_0 : i32, i32, i32
  }
  func.func @transform_3(%arg0: i32, %arg1: i32) -> (i32, i32, i32) {
    %c0_i32 = arith.constant 0 : i32
    %c0_i32_0 = arith.constant 0 : i32
    return %arg0, %arg1, %c0_i32 : i32, i32, i32
  }
}

</mosaic_0001>

<llo_original>
// kernel: tpu_custom_call.1
$region0: #{tpu_custom_call.1}
  #allocation0 [shape = 'u32[]', space=smem, size = 0x4, offset = 0x4, fixed_abs, tag = 'smem constant byte address 0x4 - core index']
  #allocation1 [shape = 'u32[144,128]{1,0:T(1,128)}', space=vmem, size = 0x12000, scoped, tag = 'internal scratch']
  %s0 = inlined_call_operand.hbm [shape: f32[8,8,8], index: 0, kind: input, shape index: {}]
  %s1 = inlined_call_operand.hbm [shape: f32[8,8,8], index: 1, kind: input, shape index: {}]
  %s2 = inlined_call_operand.hbm [shape: f32[8,8,8], index: 2, kind: input, shape index: {}]
  %s3 = inlined_call_operand.hbm [shape: f32[8,8,8], index: 3, kind: output, shape index: {}]
  %s4 = sld [smem:[#allocation0]]
  $region57: #{tpu_custom_call.1} parent=0
    _
  %s6 = ssub.s32 1, %s4
  %s7 = scalar_select 0, %s6, %s4
  $region1: #{tpu_custom_call.1} parent=0
    #allocation2 [shape = 'u8[32768]{0}', space=vmem, size = 0x8000, scoped, tag = 'input window, operand 0']
    #allocation3 [shape = 's32[2]{0}', space=sflag, size = 0x8, scoped, tag = 'scoped memory for tpu_custom_call.1']
    #allocation4 [shape = 's32[2]{0}', space=sflag, size = 0x8, scoped, tag = 'scoped memory for tpu_custom_call.1']
    #allocation5 [shape = 'u8[32768]{0}', space=vmem, size = 0x8000, scoped, tag = 'input window, operand 1']
    #allocation6 [shape = 's32[2]{0}', space=sflag, size = 0x8, scoped, tag = 'scoped memory for tpu_custom_call.1']
    #allocation7 [shape = 'u8[32768]{0}', space=vmem, size = 0x8000, scoped, tag = 'input window, operand 2']
    #allocation8 [shape = 'u8[32768]{0}', space=vmem, size = 0x8000, scoped, tag = 'output window, operand 0']
    %8 = vsyncpa [#allocation3], 0
    %s9 = scalar_lea.sflag [#allocation3], 1
    %10 = vsyncpa %s9, 0
    %11 = vsyncpa [#allocation6], 0
    %s12 = scalar_lea.sflag [#allocation6], 1
    %13 = vsyncpa %s12, 0
    %14 = vsyncpa [#allocation4], 0
    %s15 = scalar_lea.sflag [#allocation4], 1
    %16 = vsyncpa %s15, 0
    loop: start=0, step=1, limit=4
    $region2: #{tpu_custom_call.1} parent=1 // loop_pre_header
      _
    $region3: #{tpu_custom_call.1} parent=1 // loop_header
      %s18 = sphi 0, %s22
      %p19 = scmp.ge.s32.totalorder %s18, 4
      %s25 = sphi 0, %s37
      %s26 = sphi 0, %s33
      %s27 = sphi 0, %s25
      %s28 = sphi 0, %s26
      %s29 = sphi 0, %s27
      %s30 = sphi 0, %s28
      %s42 = sphi 0, %s44
      %s45 = sphi 0, %s42
      %s46 = sphi 0, %s45
      %s62 = sphi 0, %s46
      %s68 = sphi 0, %s70
      %s71 = sphi 0, %s68
      %s72 = sphi 0, %s71
      %s88 = sphi 0, %s72
      %s94 = sphi 0, %s96
      %s97 = sphi 0, %s94
      %s98 = sphi 0, %s97
      %s114 = sphi 0, %s98
      %s122 = sphi 0, %s124
      %s125 = sphi 0, %s122
      %s126 = sphi 0, %s125
      %s142 = sphi 0, %s126
    $region4: #{tpu_custom_call.1} parent=1 // loop_header_branch
      %21 = sbr.rel (%p19) target = $region8
    $region5: #{tpu_custom_call.1} parent=1 // loop_body
      %s23 = ssub.s32 %s18, 1
      %s24 = ssub.s32 %s18, 2
      %s31 = sadd.s32 1, %s26
      %p32 = scmp.ge.s32.totalorder %s31, 1
      %s33 = scalar_select %p32, 0, %s31
      %s34 = sadd.s32 1, %s25
      %s35 = scalar_select %p32, %s34, %s25
      %p36 = scmp.ge.s32.totalorder %s35, 2
      %s37 = scalar_select %p36, 0, %s35
      %s38 = ssub.s32 %s25, %s37
      %s39 = ssub.s32 %s26, %s33
      %s40 = sor.u32 %s38, %s39
      %p41 = scmp.eq.s32.totalorder %s40, 0
      %s43 = sadd.s32 %s42, 1
      %s44 = scalar_select %p41, %s42, %s43
      %p47 = pneg %p41
      %p48 = scmp.eq.s32.totalorder %s18, 1
      %p49 = por %p47, %p48
      %p50 = scmp.ne.s32.totalorder %s42, %s45
      %p51 = scmp.eq.s32.totalorder %s18, 0
      %p52 = por %p50, %p51
      %p53 = scmp.ne.s32.totalorder %s42, %s45
      %p54 = scmp.eq.s32.totalorder %s23, 1
      %p55 = por %p53, %p54
      %p56 = scmp.ne.s32.totalorder %s45, %s46
      %p57 = scmp.eq.s32.totalorder %s23, 0
      %p58 = por %p56, %p57
      %p59 = scmp.ne.s32.totalorder %s45, %s46
      %p60 = scmp.eq.s32.totalorder %s24, 1
      %p61 = por %p59, %p60
      %p63 = scmp.ne.s32.totalorder %s46, %s62
      %p64 = scmp.eq.s32.totalorder %s24, 0
      %p65 = por %p63, %p64
      %s66 = ssub.s32 %s25, %s37
      %p67 = scmp.eq.s32.totalorder %s66, 0
      %s69 = sadd.s32 %s68, 1
      %s70 = scalar_select %p67, %s68, %s69
      %p73 = pneg %p67
      %p74 = scmp.eq.s32.totalorder %s18, 1
      %p75 = por %p73, %p74
      %p76 = scmp.ne.s32.totalorder %s68, %s71
      %p77 = scmp.eq.s32.totalorder %s18, 0
      %p78 = por %p76, %p77
      %p79 = scmp.ne.s32.totalorder %s68, %s71
      %p80 = scmp.eq.s32.totalorder %s23, 1
      %p81 = por %p79, %p80
      %p82 = scmp.ne.s32.totalorder %s71, %s72
      %p83 = scmp.eq.s32.totalorder %s23, 0
      %p84 = por %p82, %p83
      %p85 = scmp.ne.s32.totalorder %s71, %s72
      %p86 = scmp.eq.s32.totalorder %s24, 1
      %p87 = por %p85, %p86
      %p89 = scmp.ne.s32.totalorder %s72, %s88
      %p90 = scmp.eq.s32.totalorder %s24, 0
      %p91 = por %p89, %p90
      %s92 = ssub.s32 %s25, %s37
      %p93 = scmp.eq.s32.totalorder %s92, 0
      %s95 = sadd.s32 %s94, 1
      %s96 = scalar_select %p93, %s94, %s95
      %p99 = pneg %p93
      %p100 = scmp.eq.s32.totalorder %s18, 1
      %p101 = por %p99, %p100
      %p102 = scmp.ne.s32.totalorder %s94, %s97
      %p103 = scmp.eq.s32.totalorder %s18, 0
      %p104 = por %p102, %p103
      %p105 = scmp.ne.s32.totalorder %s94, %s97
      %p106 = scmp.eq.s32.totalorder %s23, 1
      %p107 = por %p105, %p106
      %p108 = scmp.ne.s32.totalorder %s97, %s98
      %p109 = scmp.eq.s32.totalorder %s23, 0
      %p110 = por %p108, %p109
      %p111 = scmp.ne.s32.totalorder %s97, %s98
      %p112 = scmp.eq.s32.totalorder %s24, 1
      %p113 = por %p111, %p112
      %p115 = scmp.ne.s32.totalorder %s98, %s114
      %p116 = scmp.eq.s32.totalorder %s24, 0
      %p117 = por %p115, %p116
      %s118 = ssub.s32 %s25, %s37
      %s119 = ssub.s32 %s26, %s33
      %s120 = sor.u32 %s118, %s119
      %p121 = scmp.eq.s32.totalorder %s120, 0
      %s123 = sadd.s32 %s122, 1
      %s124 = scalar_select %p121, %s122, %s123
      %p127 = pneg %p121
      %p128 = scmp.eq.s32.totalorder %s18, 1
      %p129 = por %p127, %p128
      %p130 = scmp.ne.s32.totalorder %s122, %s125
      %p131 = scmp.eq.s32.totalorder %s18, 0
      %p132 = por %p130, %p131
      %p133 = scmp.ne.s32.totalorder %s122, %s125
      %p134 = scmp.eq.s32.totalorder %s23, 1
      %p135 = por %p133, %p134
      %p136 = scmp.ne.s32.totalorder %s125, %s126
      %p137 = scmp.eq.s32.totalorder %s23, 0
      %p138 = por %p136, %p137
      %p139 = scmp.ne.s32.totalorder %s125, %s126
      %p140 = scmp.eq.s32.totalorder %s24, 1
      %p141 = por %p139, %p140
      %p143 = scmp.ne.s32.totalorder %s126, %s142
      %p144 = scmp.eq.s32.totalorder %s24, 0
      %p145 = por %p143, %p144
      %p146 = scmp.le.s32.totalorder 1, %s18
      %p147 = scmp.lt.s32.totalorder %s18, 3
      %p148 = pnand %p146, %p147
      %p149 = pneg %p148
      // Predicated region
      $region9: #{tpu_custom_call.1} parent=5 // pred_check
        _
      $region10: #{tpu_custom_call.1} parent=5 // pred_check_branch
        %151 = sbr.rel (%p148) target = $region12
      $region11: #{tpu_custom_call.1} parent=5 // pred_region
        %s152 = ssub.s32 %s18, 1
      $region12: #{tpu_custom_call.1} parent=5 // pred_fallthru
        _
      %p153 = scmp.lt.s32.totalorder %s18, 2
      // Predicated region
      $region13: #{tpu_custom_call.1} parent=5 // pred_check
        %p154 = pneg %p153
      $region14: #{tpu_custom_call.1} parent=5 // pred_check_branch
        %156 = sbr.rel (%p154) target = $region16
      $region15: #{tpu_custom_call.1} parent=5 // pred_region
        // Predicated region
        $region17: #{tpu_custom_call.1} parent=15 // pred_check
          %p157 = pneg %p52
        $region18: #{tpu_custom_call.1} parent=15 // pred_check_branch
          %159 = sbr.rel (%p157) target = $region20
        $region19: #{tpu_custom_call.1} parent=15 // pred_region
          %s160 = sand.u32 %s42, 1
          %s161 = scalar_lea.sflag [#allocation3], %s160
          %s162 = sand.u32 %s42, 1
          %s163 = smul.addr %s162, 32
          %s164 = scalar_lea.vmem [#allocation2], %s163
          %s165 = smul.u32 4, %s25
          %s167 = ssub.s32 512, 512
          %168 = vsyncadd %s161, %s167
          %s169 = sadd.s32 %s26, %s165
          %s170 = smul.addr %s169, 128
          %s171 = scalar_lea.hbm %s0, %s170
          %s172 = sshll.u32 %s164, 4
          %s173 = int_to_ptr.vmem [resolvable:$true] %s172
          %178 = dma.hbm_to_vmem [thread:$0]  %s171, 512, %s173, %s161, 128, 128, 8
        $region20: #{tpu_custom_call.1} parent=15 // pred_fallthru
          _
        // Predicated region
        $region21: #{tpu_custom_call.1} parent=15 // pred_check
          %p179 = pneg %p78
        $region22: #{tpu_custom_call.1} parent=15 // pred_check_branch
          %181 = sbr.rel (%p179) target = $region24
        $region23: #{tpu_custom_call.1} parent=15 // pred_region
          %s182 = sand.u32 %s18, 1
          %s183 = scalar_lea.sflag [#allocation6], %s182
          %s184 = sand.u32 %s68, 1
          %s185 = smul.addr %s184, 32
          %s186 = scalar_lea.vmem [#allocation5], %s185
          %s187 = smul.u32 4, %s25
          %s189 = ssub.s32 512, 512
          %190 = vsyncadd %s183, %s189
          %s191 = smul.addr %s187, 128
          %s192 = scalar_lea.hbm %s1, %s191
          %s193 = sshll.u32 %s186, 4
          %s194 = int_to_ptr.vmem [resolvable:$true] %s193
          %199 = dma.hbm_to_vmem [thread:$0]  %s192, 512, %s194, %s183, 128, 128, 8
        $region24: #{tpu_custom_call.1} parent=15 // pred_fallthru
          _
        // Predicated region
        $region25: #{tpu_custom_call.1} parent=15 // pred_check
          %p200 = pneg %p104
        $region26: #{tpu_custom_call.1} parent=15 // pred_check_branch
          %202 = sbr.rel (%p200) target = $region28
        $region27: #{tpu_custom_call.1} parent=15 // pred_region
          %s203 = sand.u32 %s18, 1
          %s204 = scalar_lea.sflag [#allocation6], %s203
          %s205 = sand.u32 %s94, 1
          %s206 = smul.addr %s205, 32
          %s207 = scalar_lea.vmem [#allocation7], %s206
          %s208 = smul.u32 4, %s25
          %s210 = ssub.s32 512, 512
          %211 = vsyncadd %s204, %s210
          %s212 = smul.addr %s208, 128
          %s213 = scalar_lea.hbm %s2, %s212
          %s214 = sshll.u32 %s207, 4
          %s215 = int_to_ptr.vmem [resolvable:$true] %s214
          %220 = dma.hbm_to_vmem [thread:$0]  %s213, 512, %s215, %s204, 128, 128, 8
        $region28: #{tpu_custom_call.1} parent=15 // pred_fallthru
          _
      $region16: #{tpu_custom_call.1} parent=5 // pred_fallthru
        _
      %p221 = scmp.le.s32.totalorder 1, %s18
      %p222 = scmp.lt.s32.totalorder %s18, 3
      %p223 = pnand %p221, %p222
      %p224 = pneg %p223
      // Predicated region
      $region29: #{tpu_custom_call.1} parent=5 // pred_check
        _
      $region30: #{tpu_custom_call.1} parent=5 // pred_check_branch
        %226 = sbr.rel (%p223) target = $region32
      $region31: #{tpu_custom_call.1} parent=5 // pred_region
        %s227 = ssub.s32 %s18, 1
        %s228 = sand.u32 %s45, 1
        %s229 = scalar_lea.sflag [#allocation3], %s228
        %s230 = sand.u32 %s45, 1
        %s231 = smul.addr %s230, 32
        %s232 = scalar_lea.vmem [#allocation2], %s231
        // Predicated region
        $region33: #{tpu_custom_call.1} parent=31 // pred_check
          %p233 = pneg %p58
        $region34: #{tpu_custom_call.1} parent=31 // pred_check_branch
          %235 = sbr.rel (%p233) target = $region36
        $region35: #{tpu_custom_call.1} parent=31 // pred_region
          %236 = dma.done %s229, 512
        $region36: #{tpu_custom_call.1} parent=31 // pred_fallthru
          _
        %s237 = sand.u32 %s23, 1
        %s238 = scalar_lea.sflag [#allocation6], %s237
        %s239 = sand.u32 %s71, 1
        %s240 = smul.addr %s239, 32
        %s241 = scalar_lea.vmem [#allocation5], %s240
        // Predicated region
        $region37: #{tpu_custom_call.1} parent=31 // pred_check
          %p242 = pneg %p84
        $region38: #{tpu_custom_call.1} parent=31 // pred_check_branch
          %244 = sbr.rel (%p242) target = $region40
        $region39: #{tpu_custom_call.1} parent=31 // pred_region
          %245 = dma.done %s238, 512
        $region40: #{tpu_custom_call.1} parent=31 // pred_fallthru
          _
        %s246 = sand.u32 %s23, 1
        %s247 = scalar_lea.sflag [#allocation6], %s246
        %s248 = sand.u32 %s97, 1
        %s249 = smul.addr %s248, 32
        %s250 = scalar_lea.vmem [#allocation7], %s249
        // Predicated region
        $region41: #{tpu_custom_call.1} parent=31 // pred_check
          %p251 = pneg %p110
        $region42: #{tpu_custom_call.1} parent=31 // pred_check_branch
          %253 = sbr.rel (%p251) target = $region44
        $region43: #{tpu_custom_call.1} parent=31 // pred_region
          %254 = dma.done %s247, 512
        $region44: #{tpu_custom_call.1} parent=31 // pred_fallthru
          _
        %s255 = sand.u32 %s45, 1
        %s256 = scalar_lea.sflag [#allocation3], %s255
        %s257 = sand.u32 %s45, 1
        %s258 = smul.addr %s257, 32
        %s259 = scalar_lea.vmem [#allocation2], %s258
        %p260 = pneg %p58
        %p261 = pneg %p55
        %s262 = sand.u32 %s23, 1
        %s263 = scalar_lea.sflag [#allocation6], %s262
        %s264 = sand.u32 %s71, 1
        %s265 = smul.addr %s264, 32
        %s266 = scalar_lea.vmem [#allocation5], %s265
        %p267 = pneg %p84
        %p268 = pneg %p81
        %s269 = sand.u32 %s23, 1
        %s270 = scalar_lea.sflag [#allocation6], %s269
        %s271 = sand.u32 %s97, 1
        %s272 = smul.addr %s271, 32
        %s273 = scalar_lea.vmem [#allocation7], %s272
        %p274 = pneg %p110
        %p275 = pneg %p107
        %p276 = pneg %p138
        %p277 = pneg %p135
        %s278 = sand.u32 %s125, 1
        %s279 = scalar_lea.sflag [#allocation4], %s278
        %s280 = sand.u32 %s125, 1
        %s281 = smul.addr %s280, 32
        %s282 = scalar_lea.vmem [#allocation8], %s281
        %s283 = smul.u32 4, %s27
        %s284 = smul.u32 4, %s27
        %s285 = smul.u32 4, %s27
        %s286 = smul.u32 4, %s27
        %v287 = vld [vmem:[%s232] sm:$0xff]
        %v288 = vld [vmem:[%s232 + $0x8] sm:$0xff]
        %v289 = vld [vmem:[%s232 + $0x10] sm:$0xff]
        %v290 = vld [vmem:[%s232 + $0x18] sm:$0xff]
        %v291 = vmul.f32 %v287, 0.35355338
        %v292 = vmul.f32 %v288, 0.35355338
        %v293 = vmul.f32 %v289, 0.35355338
        %v294 = vmul.f32 %v290, 0.35355338
        %v295 = vld [vmem:[%s241] sm:$0xff]
        %v296 = vld [vmem:[%s241 + $0x8] sm:$0xff]
        %v297 = vld [vmem:[%s241 + $0x10] sm:$0xff]
        %v298 = vld [vmem:[%s241 + $0x18] sm:$0xff]
        %v299 = vld [vmem:[%s250] sm:$0xff]
        %v300 = vld [vmem:[%s250 + $0x8] sm:$0xff]
        %v301 = vld [vmem:[%s250 + $0x10] sm:$0xff]
        %v302 = vld [vmem:[%s250 + $0x18] sm:$0xff]
        %vm303 = vcmask 64512
        %v305 = vsel %vm303, %v291, 0
        %v308 = vsel %vm303, %v295, 0
        %310 = vmatprep.subr.mxu0 0.0
        %311 = vmatpush1.xpose.msra.mxu0 0.0
        %312 = vmatprep.subr.mxu0 0.0
        %313 = vmatpush1.xpose.msra.mxu0 0.0
        %314 = vmatprep.subr.mxu0 0.0
        %315 = vmatpush1.xpose.msra.mxu0 0.0
        %316 = vmatprep.subr.mxu0 0.0
        %317 = vmatpush1.xpose.msra.mxu0 0.0
        %318 = vmatprep.subr.mxu0 0.0
        %319 = vmatpush1.xpose.msra.mxu0 0.0
        %320 = vmatprep.subr.mxu0 0.0
        %321 = vmatpush1.xpose.msra.mxu0 0.0
        %322 = vmatprep.subr.mxu0 0.0
        %323 = vmatpush1.xpose.msra.mxu0 0.0
        %324 = vmatprep.subr.mxu0 0.0
        %325 = vmatpush1.xpose.msra.mxu0 0.0
        %326 = vmatprep.subr.mxu0 0.0
        %327 = vmatpush1.xpose.msra.mxu0 0.0
        %328 = vmatprep.subr.mxu0 0.0
        %329 = vmatpush1.xpose.msra.mxu0 0.0
        %330 = vmatprep.subr.mxu0 0.0
        %331 = vmatpush1.xpose.msra.mxu0 0.0
        %332 = vmatprep.subr.mxu0 0.0
        %333 = vmatpush1.xpose.msra.mxu0 0.0
        %334 = vmatprep.subr.mxu0 0.0
        %335 = vmatpush1.xpose.msra.mxu0 0.0
        %336 = vmatprep.subr.mxu0 0.0
        %337 = vmatpush1.xpose.msra.mxu0 0.0
        %338 = vmatprep.subr.mxu0 0.0
        %339 = vmatpush1.xpose.msra.mxu0 0.0
        %340 = vmatprep.subr.mxu0 0.0
        %341 = vmatpush1.xpose.msra.mxu0 %v308
        %342 = vmatprep.subr.mxu0 0.0
        %343 = vmatpush2.xpose.msra.mxu0 0.0
        %344 = vmatprep.subr.mxu0 0.0
        %345 = vmatpush2.xpose.msra.mxu0 0.0
        %346 = vmatprep.subr.mxu0 0.0
        %347 = vmatpush2.xpose.msra.mxu0 0.0
        %348 = vmatprep.subr.mxu0 0.0
        %349 = vmatpush2.xpose.msra.mxu0 0.0
        %350 = vmatprep.subr.mxu0 0.0
        %351 = vmatpush2.xpose.msra.mxu0 0.0
        %352 = vmatprep.subr.mxu0 0.0
        %353 = vmatpush2.xpose.msra.mxu0 0.0
        %354 = vmatprep.subr.mxu0 0.0
        %355 = vmatpush2.xpose.msra.mxu0 0.0
        %356 = vmatprep.subr.mxu0 0.0
        %357 = vmatpush2.xpose.msra.mxu0 0.0
        %358 = vmatprep.subr.mxu0 0.0
        %359 = vmatpush2.xpose.msra.mxu0 0.0
        %360 = vmatprep.subr.mxu0 0.0
        %361 = vmatpush2.xpose.msra.mxu0 0.0
        %362 = vmatprep.subr.mxu0 0.0
        %363 = vmatpush2.xpose.msra.mxu0 0.0
        %364 = vmatprep.subr.mxu0 0.0
        %365 = vmatpush2.xpose.msra.mxu0 0.0
        %366 = vmatprep.subr.mxu0 0.0
        %367 = vmatpush2.xpose.msra.mxu0 0.0
        %368 = vmatprep.subr.mxu0 0.0
        %369 = vmatpush2.xpose.msra.mxu0 0.0
        %370 = vmatprep.subr.mxu0 0.0
        %371 = vmatpush2.xpose.msra.mxu0 0.0
        %372 = vmatprep.subr.mxu0 0.0
        %373 = vmatpush2.xpose.msra.mxu0 0.0
        %374 = vmatprep.mubr.f32.mxu0 0.0
        %375 = vmatmul.mubr.f32.gmra.mxu0 %v305
        %v376 = vpop.f32.mrf.mxu0
        %v377 = vadd.f32 0.0, %v376
        %v378 = vpop.f32.mrf.mxu0
        %379 = vdwg.mxu0
        %v381 = vsel %vm303, %v292, 0
        %v384 = vsel %vm303, %v296, 0
        %386 = vmatprep.subr.mxu0 0.0
        %387 = vmatpush1.xpose.msra.mxu0 0.0
        %388 = vmatprep.subr.mxu0 0.0
        %389 = vmatpush1.xpose.msra.mxu0 0.0
        %390 = vmatprep.subr.mxu0 0.0
        %391 = vmatpush1.xpose.msra.mxu0 0.0
        %392 = vmatprep.subr.mxu0 0.0
        %393 = vmatpush1.xpose.msra.mxu0 0.0
        %394 = vmatprep.subr.mxu0 0.0
        %395 = vmatpush1.xpose.msra.mxu0 0.0
        %396 = vmatprep.subr.mxu0 0.0
        %397 = vmatpush1.xpose.msra.mxu0 0.0
        %398 = vmatprep.subr.mxu0 0.0
        %399 = vmatpush1.xpose.msra.mxu0 0.0
        %400 = vmatprep.subr.mxu0 0.0
        %401 = vmatpush1.xpose.msra.mxu0 0.0
        %402 = vmatprep.subr.mxu0 0.0
        %403 = vmatpush1.xpose.msra.mxu0 0.0
        %404 = vmatprep.subr.mxu0 0.0
        %405 = vmatpush1.xpose.msra.mxu0 0.0
        %406 = vmatprep.subr.mxu0 0.0
        %407 = vmatpush1.xpose.msra.mxu0 0.0
        %408 = vmatprep.subr.mxu0 0.0
        %409 = vmatpush1.xpose.msra.mxu0 0.0
        %410 = vmatprep.subr.mxu0 0.0
        %411 = vmatpush1.xpose.msra.mxu0 0.0
        %412 = vmatprep.subr.mxu0 0.0
        %413 = vmatpush1.xpose.msra.mxu0 0.0
        %414 = vmatprep.subr.mxu0 0.0
        %415 = vmatpush1.xpose.msra.mxu0 0.0
        %416 = vmatprep.subr.mxu0 0.0
        %417 = vmatpush1.xpose.msra.mxu0 %v384
        %418 = vmatprep.subr.mxu0 0.0
        %419 = vmatpush2.xpose.msra.mxu0 0.0
        %420 = vmatprep.subr.mxu0 0.0
        %421 = vmatpush2.xpose.msra.mxu0 0.0
        %422 = vmatprep.subr.mxu0 0.0
        %423 = vmatpush2.xpose.msra.mxu0 0.0
        %424 = vmatprep.subr.mxu0 0.0
        %425 = vmatpush2.xpose.msra.mxu0 0.0
        %426 = vmatprep.subr.mxu0 0.0
        %427 = vmatpush2.xpose.msra.mxu0 0.0
        %428 = vmatprep.subr.mxu0 0.0
        %429 = vmatpush2.xpose.msra.mxu0 0.0
        %430 = vmatprep.subr.mxu0 0.0
        %431 = vmatpush2.xpose.msra.mxu0 0.0
        %432 = vmatprep.subr.mxu0 0.0
        %433 = vmatpush2.xpose.msra.mxu0 0.0
        %434 = vmatprep.subr.mxu0 0.0
        %435 = vmatpush2.xpose.msra.mxu0 0.0
        %436 = vmatprep.subr.mxu0 0.0
        %437 = vmatpush2.xpose.msra.mxu0 0.0
        %438 = vmatprep.subr.mxu0 0.0
        %439 = vmatpush2.xpose.msra.mxu0 0.0
        %440 = vmatprep.subr.mxu0 0.0
        %441 = vmatpush2.xpose.msra.mxu0 0.0
        %442 = vmatprep.subr.mxu0 0.0
        %443 = vmatpush2.xpose.msra.mxu0 0.0
        %444 = vmatprep.subr.mxu0 0.0
        %445 = vmatpush2.xpose.msra.mxu0 0.0
        %446 = vmatprep.subr.mxu0 0.0
        %447 = vmatpush2.xpose.msra.mxu0 0.0
        %448 = vmatprep.subr.mxu0 0.0
        %449 = vmatpush2.xpose.msra.mxu0 0.0
        %450 = vmatprep.mubr.f32.mxu0 0.0
        %451 = vmatmul.mubr.f32.gmra.mxu0 %v381
        %v452 = vpop.f32.mrf.mxu0
        %v453 = vadd.f32 0.0, %v452
        %v454 = vpop.f32.mrf.mxu0
        %455 = vdwg.mxu0
        %v457 = vsel %vm303, %v293, 0
        %v460 = vsel %vm303, %v297, 0
        %462 = vmatprep.subr.mxu0 0.0
        %463 = vmatpush1.xpose.msra.mxu0 0.0
        %464 = vmatprep.subr.mxu0 0.0
        %465 = vmatpush1.xpose.msra.mxu0 0.0
        %466 = vmatprep.subr.mxu0 0.0
        %467 = vmatpush1.xpose.msra.mxu0 0.0
        %468 = vmatprep.subr.mxu0 0.0
        %469 = vmatpush1.xpose.msra.mxu0 0.0
        %470 = vmatprep.subr.mxu0 0.0
        %471 = vmatpush1.xpose.msra.mxu0 0.0
        %472 = vmatprep.subr.mxu0 0.0
        %473 = vmatpush1.xpose.msra.mxu0 0.0
        %474 = vmatprep.subr.mxu0 0.0
        %475 = vmatpush1.xpose.msra.mxu0 0.0
        %476 = vmatprep.subr.mxu0 0.0
        %477 = vmatpush1.xpose.msra.mxu0 0.0
        %478 = vmatprep.subr.mxu0 0.0
        %479 = vmatpush1.xpose.msra.mxu0 0.0
        %480 = vmatprep.subr.mxu0 0.0
        %481 = vmatpush1.xpose.msra.mxu0 0.0
        %482 = vmatprep.subr.mxu0 0.0
        %483 = vmatpush1.xpose.msra.mxu0 0.0
        %484 = vmatprep.subr.mxu0 0.0
        %485 = vmatpush1.xpose.msra.mxu0 0.0
        %486 = vmatprep.subr.mxu0 0.0
        %487 = vmatpush1.xpose.msra.mxu0 0.0
        %488 = vmatprep.subr.mxu0 0.0
        %489 = vmatpush1.xpose.msra.mxu0 0.0
        %490 = vmatprep.subr.mxu0 0.0
        %491 = vmatpush1.xpose.msra.mxu0 0.0
        %492 = vmatprep.subr.mxu0 0.0
        %493 = vmatpush1.xpose.msra.mxu0 %v460
        %494 = vmatprep.subr.mxu0 0.0
        %495 = vmatpush2.xpose.msra.mxu0 0.0
        %496 = vmatprep.subr.mxu0 0.0
        %497 = vmatpush2.xpose.msra.mxu0 0.0
        %498 = vmatprep.subr.mxu0 0.0
        %499 = vmatpush2.xpose.msra.mxu0 0.0
        %500 = vmatprep.subr.mxu0 0.0
        %501 = vmatpush2.xpose.msra.mxu0 0.0
        %502 = vmatprep.subr.mxu0 0.0
        %503 = vmatpush2.xpose.msra.mxu0 0.0
        %504 = vmatprep.subr.mxu0 0.0
        %505 = vmatpush2.xpose.msra.mxu0 0.0
        %506 = vmatprep.subr.mxu0 0.0
        %507 = vmatpush2.xpose.msra.mxu0 0.0
        %508 = vmatprep.subr.mxu0 0.0
        %509 = vmatpush2.xpose.msra.mxu0 0.0
        %510 = vmatprep.subr.mxu0 0.0
        %511 = vmatpush2.xpose.msra.mxu0 0.0
        %512 = vmatprep.subr.mxu0 0.0
        %513 = vmatpush2.xpose.msra.mxu0 0.0
        %514 = vmatprep.subr.mxu0 0.0
        %515 = vmatpush2.xpose.msra.mxu0 0.0
        %516 = vmatprep.subr.mxu0 0.0
        %517 = vmatpush2.xpose.msra.mxu0 0.0
        %518 = vmatprep.subr.mxu0 0.0
        %519 = vmatpush2.xpose.msra.mxu0 0.0
        %520 = vmatprep.subr.mxu0 0.0
        %521 = vmatpush2.xpose.msra.mxu0 0.0
        %522 = vmatprep.subr.mxu0 0.0
        %523 = vmatpush2.xpose.msra.mxu0 0.0
        %524 = vmatprep.subr.mxu0 0.0
        %525 = vmatpush2.xpose.msra.mxu0 0.0
        %526 = vmatprep.mubr.f32.mxu0 0.0
        %527 = vmatmul.mubr.f32.gmra.mxu0 %v457
        %v528 = vpop.f32.mrf.mxu0
        %v529 = vadd.f32 0.0, %v528
        %v530 = vpop.f32.mrf.mxu0
        %531 = vdwg.mxu0
        %v533 = vsel %vm303, %v294, 0
        %v536 = vsel %vm303, %v298, 0
        %538 = vmatprep.subr.mxu0 0.0
        %539 = vmatpush1.xpose.msra.mxu0 0.0
        %540 = vmatprep.subr.mxu0 0.0
        %541 = vmatpush1.xpose.msra.mxu0 0.0
        %542 = vmatprep.subr.mxu0 0.0
        %543 = vmatpush1.xpose.msra.mxu0 0.0
        %544 = vmatprep.subr.mxu0 0.0
        %545 = vmatpush1.xpose.msra.mxu0 0.0
        %546 = vmatprep.subr.mxu0 0.0
        %547 = vmatpush1.xpose.msra.mxu0 0.0
        %548 = vmatprep.subr.mxu0 0.0
        %549 = vmatpush1.xpose.msra.mxu0 0.0
        %550 = vmatprep.subr.mxu0 0.0
        %551 = vmatpush1.xpose.msra.mxu0 0.0
        %552 = vmatprep.subr.mxu0 0.0
        %553 = vmatpush1.xpose.msra.mxu0 0.0
        %554 = vmatprep.subr.mxu0 0.0
        %555 = vmatpush1.xpose.msra.mxu0 0.0
        %556 = vmatprep.subr.mxu0 0.0
        %557 = vmatpush1.xpose.msra.mxu0 0.0
        %558 = vmatprep.subr.mxu0 0.0
        %559 = vmatpush1.xpose.msra.mxu0 0.0
        %560 = vmatprep.subr.mxu0 0.0
        %561 = vmatpush1.xpose.msra.mxu0 0.0
        %562 = vmatprep.subr.mxu0 0.0
        %563 = vmatpush1.xpose.msra.mxu0 0.0
        %564 = vmatprep.subr.mxu0 0.0
        %565 = vmatpush1.xpose.msra.mxu0 0.0
        %566 = vmatprep.subr.mxu0 0.0
        %567 = vmatpush1.xpose.msra.mxu0 0.0
        %568 = vmatprep.subr.mxu0 0.0
        %569 = vmatpush1.xpose.msra.mxu0 %v536
        %570 = vmatprep.subr.mxu0 0.0
        %571 = vmatpush2.xpose.msra.mxu0 0.0
        %572 = vmatprep.subr.mxu0 0.0
        %573 = vmatpush2.xpose.msra.mxu0 0.0
        %574 = vmatprep.subr.mxu0 0.0
        %575 = vmatpush2.xpose.msra.mxu0 0.0
        %576 = vmatprep.subr.mxu0 0.0
        %577 = vmatpush2.xpose.msra.mxu0 0.0
        %578 = vmatprep.subr.mxu0 0.0
        %579 = vmatpush2.xpose.msra.mxu0 0.0
        %580 = vmatprep.subr.mxu0 0.0
        %581 = vmatpush2.xpose.msra.mxu0 0.0
        %582 = vmatprep.subr.mxu0 0.0
        %583 = vmatpush2.xpose.msra.mxu0 0.0
        %584 = vmatprep.subr.mxu0 0.0
        %585 = vmatpush2.xpose.msra.mxu0 0.0
        %586 = vmatprep.subr.mxu0 0.0
        %587 = vmatpush2.xpose.msra.mxu0 0.0
        %588 = vmatprep.subr.mxu0 0.0
        %589 = vmatpush2.xpose.msra.mxu0 0.0
        %590 = vmatprep.subr.mxu0 0.0
        %591 = vmatpush2.xpose.msra.mxu0 0.0
        %592 = vmatprep.subr.mxu0 0.0
        %593 = vmatpush2.xpose.msra.mxu0 0.0
        %594 = vmatprep.subr.mxu0 0.0
        %595 = vmatpush2.xpose.msra.mxu0 0.0
        %596 = vmatprep.subr.mxu0 0.0
        %597 = vmatpush2.xpose.msra.mxu0 0.0
        %598 = vmatprep.subr.mxu0 0.0
        %599 = vmatpush2.xpose.msra.mxu0 0.0
        %600 = vmatprep.subr.mxu0 0.0
        %601 = vmatpush2.xpose.msra.mxu0 0.0
        %602 = vmatprep.mubr.f32.mxu0 0.0
        %603 = vmatmul.mubr.f32.gmra.mxu0 %v533
        %v604 = vpop.f32.mrf.mxu0
        %v605 = vadd.f32 0.0, %v604
        %v606 = vpop.f32.mrf.mxu0
        %607 = vdwg.mxu0
        %v608 = vsel %vm303, %v377, -inf
        %609 = vmax.xlane.f32.xlu0 %v608
        %v610 = vpop.xlane.xlu0 %609
        %v611 = vsel %vm303, %v453, -inf
        %612 = vmax.xlane.f32.xlu0 %v611
        %v613 = vpop.xlane.xlu0 %612
        %v614 = vsel %vm303, %v529, -inf
        %615 = vmax.xlane.f32.xlu0 %v614
        %v616 = vpop.xlane.xlu0 %615
        %v617 = vsel %vm303, %v605, -inf
        %618 = vmax.xlane.f32.xlu0 %v617
        %v619 = vpop.xlane.xlu0 %618
        %v620 = vsub.f32 %v377, %v610
        %v621 = vsub.f32 %v453, %v613
        %v622 = vsub.f32 %v529, %v616
        %v623 = vsub.f32 %v605, %v619
        %v624 = vmul.f32 %v620, 1.442695
        %v625 = vpow.pop %v624
        %v626 = vmul.f32 %v621, 1.442695
        %v627 = vpow.pop %v626
        %v628 = vmul.f32 %v622, 1.442695
        %v629 = vpow.pop %v628
        %v630 = vmul.f32 %v623, 1.442695
        %v631 = vpow.pop %v630
        %v632 = vsel %vm303, %v625, 0.0
        %633 = vadd.xlane.f32.xlu0 %v632
        %v634 = vpop.xlane.xlu0 %633
        %v635 = vsel %vm303, %v627, 0.0
        %636 = vadd.xlane.f32.xlu0 %v635
        %v637 = vpop.xlane.xlu0 %636
        %v638 = vsel %vm303, %v629, 0.0
        %639 = vadd.xlane.f32.xlu0 %v638
        %v640 = vpop.xlane.xlu0 %639
        %v641 = vsel %vm303, %v631, 0.0
        %642 = vadd.xlane.f32.xlu0 %v641
        %v643 = vpop.xlane.xlu0 %642
        %v645 = vsel %vm303, %v625, 0
        %647 = vmatprep.subr.mxu0 0.0
        %648 = vmatpush1.msra.mxu0 0.0
        %649 = vmatprep.subr.mxu0 0.0
        %650 = vmatpush1.msra.mxu0 0.0
        %651 = vmatprep.subr.mxu0 0.0
        %652 = vmatpush1.msra.mxu0 0.0
        %653 = vmatprep.subr.mxu0 0.0
        %654 = vmatpush1.msra.mxu0 0.0
        %655 = vmatprep.subr.mxu0 0.0
        %656 = vmatpush1.msra.mxu0 0.0
        %657 = vmatprep.subr.mxu0 0.0
        %658 = vmatpush1.msra.mxu0 0.0
        %659 = vmatprep.subr.mxu0 0.0
        %660 = vmatpush1.msra.mxu0 0.0
        %661 = vmatprep.subr.mxu0 0.0
        %662 = vmatpush1.msra.mxu0 0.0
        %663 = vmatprep.subr.mxu0 0.0
        %664 = vmatpush1.msra.mxu0 0.0
        %665 = vmatprep.subr.mxu0 0.0
        %666 = vmatpush1.msra.mxu0 0.0
        %667 = vmatprep.subr.mxu0 0.0
        %668 = vmatpush1.msra.mxu0 0.0
        %669 = vmatprep.subr.mxu0 0.0
        %670 = vmatpush1.msra.mxu0 0.0
        %671 = vmatprep.subr.mxu0 0.0
        %672 = vmatpush1.msra.mxu0 0.0
        %673 = vmatprep.subr.mxu0 0.0
        %674 = vmatpush1.msra.mxu0 0.0
        %675 = vmatprep.subr.mxu0 0.0
        %676 = vmatpush1.msra.mxu0 0.0
        %677 = vmatprep.subr.mxu0 0.0
        %678 = vmatpush1.msra.mxu0 %v299
        %679 = vmatprep.subr.mxu0 0.0
        %680 = vmatpush2.msra.mxu0 0.0
        %681 = vmatprep.subr.mxu0 0.0
        %682 = vmatpush2.msra.mxu0 0.0
        %683 = vmatprep.subr.mxu0 0.0
        %684 = vmatpush2.msra.mxu0 0.0
        %685 = vmatprep.subr.mxu0 0.0
        %686 = vmatpush2.msra.mxu0 0.0
        %687 = vmatprep.subr.mxu0 0.0
        %688 = vmatpush2.msra.mxu0 0.0
        %689 = vmatprep.subr.mxu0 0.0
        %690 = vmatpush2.msra.mxu0 0.0
        %691 = vmatprep.subr.mxu0 0.0
        %692 = vmatpush2.msra.mxu0 0.0
        %693 = vmatprep.subr.mxu0 0.0
        %694 = vmatpush2.msra.mxu0 0.0
        %695 = vmatprep.subr.mxu0 0.0
        %696 = vmatpush2.msra.mxu0 0.0
        %697 = vmatprep.subr.mxu0 0.0
        %698 = vmatpush2.msra.mxu0 0.0
        %699 = vmatprep.subr.mxu0 0.0
        %700 = vmatpush2.msra.mxu0 0.0
        %701 = vmatprep.subr.mxu0 0.0
        %702 = vmatpush2.msra.mxu0 0.0
        %703 = vmatprep.subr.mxu0 0.0
        %704 = vmatpush2.msra.mxu0 0.0
        %705 = vmatprep.subr.mxu0 0.0
        %706 = vmatpush2.msra.mxu0 0.0
        %707 = vmatprep.subr.mxu0 0.0
        %708 = vmatpush2.msra.mxu0 0.0
        %709 = vmatprep.subr.mxu0 0.0
        %710 = vmatpush2.msra.mxu0 0.0
        %711 = vmatprep.mubr.f32.mxu0 0.0
        %712 = vmatmul.mubr.f32.gmra.mxu0 %v645
        %v713 = vpop.f32.mrf.mxu0
        %v714 = vadd.f32 0.0, %v713
        %v715 = vpop.f32.mrf.mxu0
        %716 = vdwg.mxu0
        %v718 = vsel %vm303, %v627, 0
        %720 = vmatprep.subr.mxu0 0.0
        %721 = vmatpush1.msra.mxu0 0.0
        %722 = vmatprep.subr.mxu0 0.0
        %723 = vmatpush1.msra.mxu0 0.0
        %724 = vmatprep.subr.mxu0 0.0
        %725 = vmatpush1.msra.mxu0 0.0
        %726 = vmatprep.subr.mxu0 0.0
        %727 = vmatpush1.msra.mxu0 0.0
        %728 = vmatprep.subr.mxu0 0.0
        %729 = vmatpush1.msra.mxu0 0.0
        %730 = vmatprep.subr.mxu0 0.0
        %731 = vmatpush1.msra.mxu0 0.0
        %732 = vmatprep.subr.mxu0 0.0
        %733 = vmatpush1.msra.mxu0 0.0
        %734 = vmatprep.subr.mxu0 0.0
        %735 = vmatpush1.msra.mxu0 0.0
        %736 = vmatprep.subr.mxu0 0.0
        %737 = vmatpush1.msra.mxu0 0.0
        %738 = vmatprep.subr.mxu0 0.0
        %739 = vmatpush1.msra.mxu0 0.0
        %740 = vmatprep.subr.mxu0 0.0
        %741 = vmatpush1.msra.mxu0 0.0
        %742 = vmatprep.subr.mxu0 0.0
        %743 = vmatpush1.msra.mxu0 0.0
        %744 = vmatprep.subr.mxu0 0.0
        %745 = vmatpush1.msra.mxu0 0.0
        %746 = vmatprep.subr.mxu0 0.0
        %747 = vmatpush1.msra.mxu0 0.0
        %748 = vmatprep.subr.mxu0 0.0
        %749 = vmatpush1.msra.mxu0 0.0
        %750 = vmatprep.subr.mxu0 0.0
        %751 = vmatpush1.msra.mxu0 %v300
        %752 = vmatprep.subr.mxu0 0.0
        %753 = vmatpush2.msra.mxu0 0.0
        %754 = vmatprep.subr.mxu0 0.0
        %755 = vmatpush2.msra.mxu0 0.0
        %756 = vmatprep.subr.mxu0 0.0
        %757 = vmatpush2.msra.mxu0 0.0
        %758 = vmatprep.subr.mxu0 0.0
        %759 = vmatpush2.msra.mxu0 0.0
        %760 = vmatprep.subr.mxu0 0.0
        %761 = vmatpush2.msra.mxu0 0.0
        %762 = vmatprep.subr.mxu0 0.0
        %763 = vmatpush2.msra.mxu0 0.0
        %764 = vmatprep.subr.mxu0 0.0
        %765 = vmatpush2.msra.mxu0 0.0
        %766 = vmatprep.subr.mxu0 0.0
        %767 = vmatpush2.msra.mxu0 0.0
        %768 = vmatprep.subr.mxu0 0.0
        %769 = vmatpush2.msra.mxu0 0.0
        %770 = vmatprep.subr.mxu0 0.0
        %771 = vmatpush2.msra.mxu0 0.0
        %772 = vmatprep.subr.mxu0 0.0
        %773 = vmatpush2.msra.mxu0 0.0
        %774 = vmatprep.subr.mxu0 0.0
        %775 = vmatpush2.msra.mxu0 0.0
        %776 = vmatprep.subr.mxu0 0.0
        %777 = vmatpush2.msra.mxu0 0.0
        %778 = vmatprep.subr.mxu0 0.0
        %779 = vmatpush2.msra.mxu0 0.0
        %780 = vmatprep.subr.mxu0 0.0
        %781 = vmatpush2.msra.mxu0 0.0
        %782 = vmatprep.subr.mxu0 0.0
        %783 = vmatpush2.msra.mxu0 0.0
        %784 = vmatprep.mubr.f32.mxu0 0.0
        %785 = vmatmul.mubr.f32.gmra.mxu0 %v718
        %v786 = vpop.f32.mrf.mxu0
        %v787 = vadd.f32 0.0, %v786
        %v788 = vpop.f32.mrf.mxu0
        %789 = vdwg.mxu0
        %v791 = vsel %vm303, %v629, 0
        %793 = vmatprep.subr.mxu0 0.0
        %794 = vmatpush1.msra.mxu0 0.0
        %795 = vmatprep.subr.mxu0 0.0
        %796 = vmatpush1.msra.mxu0 0.0
        %797 = vmatprep.subr.mxu0 0.0
        %798 = vmatpush1.msra.mxu0 0.0
        %799 = vmatprep.subr.mxu0 0.0
        %800 = vmatpush1.msra.mxu0 0.0
        %801 = vmatprep.subr.mxu0 0.0
        %802 = vmatpush1.msra.mxu0 0.0
        %803 = vmatprep.subr.mxu0 0.0
        %804 = vmatpush1.msra.mxu0 0.0
        %805 = vmatprep.subr.mxu0 0.0
        %806 = vmatpush1.msra.mxu0 0.0
        %807 = vmatprep.subr.mxu0 0.0
        %808 = vmatpush1.msra.mxu0 0.0
        %809 = vmatprep.subr.mxu0 0.0
        %810 = vmatpush1.msra.mxu0 0.0
        %811 = vmatprep.subr.mxu0 0.0
        %812 = vmatpush1.msra.mxu0 0.0
        %813 = vmatprep.subr.mxu0 0.0
        %814 = vmatpush1.msra.mxu0 0.0
        %815 = vmatprep.subr.mxu0 0.0
        %816 = vmatpush1.msra.mxu0 0.0
        %817 = vmatprep.subr.mxu0 0.0
        %818 = vmatpush1.msra.mxu0 0.0
        %819 = vmatprep.subr.mxu0 0.0
        %820 = vmatpush1.msra.mxu0 0.0
        %821 = vmatprep.subr.mxu0 0.0
        %822 = vmatpush1.msra.mxu0 0.0
        %823 = vmatprep.subr.mxu0 0.0
        %824 = vmatpush1.msra.mxu0 %v301
        %825 = vmatprep.subr.mxu0 0.0
        %826 = vmatpush2.msra.mxu0 0.0
        %827 = vmatprep.subr.mxu0 0.0
        %828 = vmatpush2.msra.mxu0 0.0
        %829 = vmatprep.subr.mxu0 0.0
        %830 = vmatpush2.msra.mxu0 0.0
        %831 = vmatprep.subr.mxu0 0.0
        %832 = vmatpush2.msra.mxu0 0.0
        %833 = vmatprep.subr.mxu0 0.0
        %834 = vmatpush2.msra.mxu0 0.0
        %835 = vmatprep.subr.mxu0 0.0
        %836 = vmatpush2.msra.mxu0 0.0
        %837 = vmatprep.subr.mxu0 0.0
        %838 = vmatpush2.msra.mxu0 0.0
        %839 = vmatprep.subr.mxu0 0.0
        %840 = vmatpush2.msra.mxu0 0.0
        %841 = vmatprep.subr.mxu0 0.0
        %842 = vmatpush2.msra.mxu0 0.0
        %843 = vmatprep.subr.mxu0 0.0
        %844 = vmatpush2.msra.mxu0 0.0
        %845 = vmatprep.subr.mxu0 0.0
        %846 = vmatpush2.msra.mxu0 0.0
        %847 = vmatprep.subr.mxu0 0.0
        %848 = vmatpush2.msra.mxu0 0.0
        %849 = vmatprep.subr.mxu0 0.0
        %850 = vmatpush2.msra.mxu0 0.0
        %851 = vmatprep.subr.mxu0 0.0
        %852 = vmatpush2.msra.mxu0 0.0
        %853 = vmatprep.subr.mxu0 0.0
        %854 = vmatpush2.msra.mxu0 0.0
        %855 = vmatprep.subr.mxu0 0.0
        %856 = vmatpush2.msra.mxu0 0.0
        %857 = vmatprep.mubr.f32.mxu0 0.0
        %858 = vmatmul.mubr.f32.gmra.mxu0 %v791
        %v859 = vpop.f32.mrf.mxu0
        %v860 = vadd.f32 0.0, %v859
        %v861 = vpop.f32.mrf.mxu0
        %862 = vdwg.mxu0
        %v864 = vsel %vm303, %v631, 0
        %866 = vmatprep.subr.mxu0 0.0
        %867 = vmatpush1.msra.mxu0 0.0
        %868 = vmatprep.subr.mxu0 0.0
        %869 = vmatpush1.msra.mxu0 0.0
        %870 = vmatprep.subr.mxu0 0.0
        %871 = vmatpush1.msra.mxu0 0.0
        %872 = vmatprep.subr.mxu0 0.0
        %873 = vmatpush1.msra.mxu0 0.0
        %874 = vmatprep.subr.mxu0 0.0
        %875 = vmatpush1.msra.mxu0 0.0
        %876 = vmatprep.subr.mxu0 0.0
        %877 = vmatpush1.msra.mxu0 0.0
        %878 = vmatprep.subr.mxu0 0.0
        %879 = vmatpush1.msra.mxu0 0.0
        %880 = vmatprep.subr.mxu0 0.0
        %881 = vmatpush1.msra.mxu0 0.0
        %882 = vmatprep.subr.mxu0 0.0
        %883 = vmatpush1.msra.mxu0 0.0
        %884 = vmatprep.subr.mxu0 0.0
        %885 = vmatpush1.msra.mxu0 0.0
        %886 = vmatprep.subr.mxu0 0.0
        %887 = vmatpush1.msra.mxu0 0.0
        %888 = vmatprep.subr.mxu0 0.0
        %889 = vmatpush1.msra.mxu0 0.0
        %890 = vmatprep.subr.mxu0 0.0
        %891 = vmatpush1.msra.mxu0 0.0
        %892 = vmatprep.subr.mxu0 0.0
        %893 = vmatpush1.msra.mxu0 0.0
        %894 = vmatprep.subr.mxu0 0.0
        %895 = vmatpush1.msra.mxu0 0.0
        %896 = vmatprep.subr.mxu0 0.0
        %897 = vmatpush1.msra.mxu0 %v302
        %898 = vmatprep.subr.mxu0 0.0
        %899 = vmatpush2.msra.mxu0 0.0
        %900 = vmatprep.subr.mxu0 0.0
        %901 = vmatpush2.msra.mxu0 0.0
        %902 = vmatprep.subr.mxu0 0.0
        %903 = vmatpush2.msra.mxu0 0.0
        %904 = vmatprep.subr.mxu0 0.0
        %905 = vmatpush2.msra.mxu0 0.0
        %906 = vmatprep.subr.mxu0 0.0
        %907 = vmatpush2.msra.mxu0 0.0
        %908 = vmatprep.subr.mxu0 0.0
        %909 = vmatpush2.msra.mxu0 0.0
        %910 = vmatprep.subr.mxu0 0.0
        %911 = vmatpush2.msra.mxu0 0.0
        %912 = vmatprep.subr.mxu0 0.0
        %913 = vmatpush2.msra.mxu0 0.0
        %914 = vmatprep.subr.mxu0 0.0
        %915 = vmatpush2.msra.mxu0 0.0
        %916 = vmatprep.subr.mxu0 0.0
        %917 = vmatpush2.msra.mxu0 0.0
        %918 = vmatprep.subr.mxu0 0.0
        %919 = vmatpush2.msra.mxu0 0.0
        %920 = vmatprep.subr.mxu0 0.0
        %921 = vmatpush2.msra.mxu0 0.0
        %922 = vmatprep.subr.mxu0 0.0
        %923 = vmatpush2.msra.mxu0 0.0
        %924 = vmatprep.subr.mxu0 0.0
        %925 = vmatpush2.msra.mxu0 0.0
        %926 = vmatprep.subr.mxu0 0.0
        %927 = vmatpush2.msra.mxu0 0.0
        %928 = vmatprep.subr.mxu0 0.0
        %929 = vmatpush2.msra.mxu0 0.0
        %930 = vmatprep.mubr.f32.mxu0 0.0
        %931 = vmatmul.mubr.f32.gmra.mxu0 %v864
        %v932 = vpop.f32.mrf.mxu0
        %v933 = vadd.f32 0.0, %v932
        %v934 = vpop.f32.mrf.mxu0
        %935 = vdwg.mxu0
        %v936 = vrcp.pop %v634
        %v937 = vmul.f32 %v714, %v936
        %v938 = vrcp.pop %v637
        %v939 = vmul.f32 %v787, %v938
        %v940 = vrcp.pop %v640
        %v941 = vmul.f32 %v860, %v940
        %v942 = vrcp.pop %v643
        %v943 = vmul.f32 %v933, %v942
        %944 = vst.msk [vmem:[%s282] sm:$0xff] %vm303, %v937
        %945 = vst.msk [vmem:[%s282 + $0x8] sm:$0xff] %vm303, %v939
        %946 = vst.msk [vmem:[%s282 + $0x10] sm:$0xff] %vm303, %v941
        %947 = vst.msk [vmem:[%s282 + $0x18] sm:$0xff] %vm303, %v943
        %s948 = sand.u32 %s125, 1
        %s949 = scalar_lea.sflag [#allocation4], %s948
        %s950 = sand.u32 %s125, 1
        %s951 = smul.addr %s950, 32
        %s952 = scalar_lea.vmem [#allocation8], %s951
        // Predicated region
        $region45: #{tpu_custom_call.1} parent=31 // pred_check
          %p953 = pneg %p135
        $region46: #{tpu_custom_call.1} parent=31 // pred_check_branch
          %955 = sbr.rel (%p953) target = $region48
        $region47: #{tpu_custom_call.1} parent=31 // pred_region
          %s956 = smul.u32 4, %s27
          %s958 = ssub.s32 512, 512
          %959 = vsyncadd %s949, %s958
          %s960 = sadd.s32 %s28, %s956
          %s961 = smul.addr %s960, 128
          %s962 = scalar_lea.hbm %s3, %s961
          %s963 = sshll.u32 %s952, 4
          %s964 = int_to_ptr.vmem [resolvable:$true] %s963
          %969 = dma.vmem_to_hbm [thread:$0]  %s964, 512, %s962, %s949, 128, 128, 8
        $region48: #{tpu_custom_call.1} parent=31 // pred_fallthru
          _
      $region32: #{tpu_custom_call.1} parent=5 // pred_fallthru
        _
      %p970 = scmp.le.s32.totalorder 2, %s18
      // Predicated region
      $region49: #{tpu_custom_call.1} parent=5 // pred_check
        %p971 = pneg %p970
      $region50: #{tpu_custom_call.1} parent=5 // pred_check_branch
        %973 = sbr.rel (%p971) target = $region52
      $region51: #{tpu_custom_call.1} parent=5 // pred_region
        %s974 = ssub.s32 %s18, 2
        // Predicated region
        $region53: #{tpu_custom_call.1} parent=51 // pred_check
          %p975 = pneg %p141
        $region54: #{tpu_custom_call.1} parent=51 // pred_check_branch
          %977 = sbr.rel (%p975) target = $region56
        $region55: #{tpu_custom_call.1} parent=51 // pred_region
          %s978 = sand.u32 %s126, 1
          %s979 = scalar_lea.sflag [#allocation4], %s978
          %s980 = sand.u32 %s126, 1
          %s981 = smul.addr %s980, 32
          %s982 = scalar_lea.vmem [#allocation8], %s981
          %983 = dma.done %s979, 512
        $region56: #{tpu_custom_call.1} parent=51 // pred_fallthru
          _
      $region52: #{tpu_custom_call.1} parent=5 // pred_fallthru
        _
    $region6: #{tpu_custom_call.1} parent=1 // loop_footer
      %s22 = sadd.s32 1, %s18
    $region7: #{tpu_custom_call.1} parent=1 // loop_footer_branch
      %17 = sbr.rel target = $region3
    $region8: #{tpu_custom_call.1} parent=1 // loop_exit
      _
    %984 = vsyncpa [#allocation3], 1
    %s985 = scalar_lea.sflag [#allocation3], 1
    %986 = vsyncpa %s985, 1
    %987 = vsyncpa [#allocation6], 1
    %s988 = scalar_lea.sflag [#allocation6], 1
    %989 = vsyncpa %s988, 1
    %990 = vsyncpa [#allocation4], 1
    %s991 = scalar_lea.sflag [#allocation4], 1
    %992 = vsyncpa %s991, 1

</llo_original>
